<compile_context>
chip_gen: v7x
topology: tpu7x:2x2x1
jax: 0.10.0
libtpu: 0.0.40
codegen_flags: <defaults>
</compile_context>

<pallas_src>
import functools

import jax
import jax.numpy as jnp
from jax import lax
from jax.experimental import pallas as pl
from jax.experimental.pallas import tpu as pltpu


_ROW_ALIGN = 16  # sublane alignment that also satisfies bf16 (16, 128) packing


# ----------------------------------------------------------------------------
# Kernel
# ----------------------------------------------------------------------------
def _self_output_kernel(x_ref, w_ref, b_ref, res_ref, g_ref, beta_ref, o_ref,
                        *, eps, feat):
    """o = LayerNorm(x @ W + b + residual) * gamma + beta  (BERT-style LN)."""
    # bf16 operands into the MXU (in-register cast, no-op for bf16 inputs),
    # f32 accumulation.
    x = x_ref[...].astype(jnp.bfloat16)                               # [tm, K]
    y = jnp.dot(x, w_ref[...], preferred_element_type=jnp.float32)    # [tm, N]
    y = y + b_ref[...].astype(jnp.float32)
    # TODO(synk): nn.Dropout is identity here (inference); no RNG dropout.
    y = y + res_ref[...].astype(jnp.float32)

    # Single-pass LayerNorm statistics in f32.  Lane-padded feature columns
    # (if any) are exactly zero end-to-end, so summing the full lane width is
    # exact; divide by the *real* feature count.
    inv_feat = 1.0 / feat
    mu = jnp.sum(y, axis=-1, keepdims=True) * inv_feat
    var = jnp.sum(y * y, axis=-1, keepdims=True) * inv_feat - mu * mu
    rstd = lax.rsqrt(var + eps)                                       # EUP slot
    o_ref[...] = ((y - mu) * (rstd * g_ref[...].astype(jnp.float32))
                  + beta_ref[...].astype(jnp.float32)).astype(o_ref.dtype)


# ----------------------------------------------------------------------------
# Wrapper
# ----------------------------------------------------------------------------
def _round_up(x, m):
    return (x + m - 1) // m * m


def m3bert_self_output(hidden_states, input_tensor, w, b, gamma, beta,
                       eps=1e-12, tm=512, out_dtype=jnp.bfloat16):
    """hidden_states, input_tensor: [..., H]; w: [H, H] stored [in, out].

    out_dtype defaults to bf16 (inference; halves writeback traffic).  Pass
    out_dtype=jnp.float32 if f32 parity with the torch module is required.
    """
    orig_shape = hidden_states.shape
    H = orig_shape[-1]
    assert w.shape == (H, H)

    # Keep activations / residual in their native dtype — no wrapper upcast.
    x2d = hidden_states.reshape(-1, H)
    res2d = input_tensor.reshape(-1, H)
    M = x2d.shape[0]

    # Parameters: weight to bf16 once (MXU dtype, halves weight traffic);
    # bias / gamma / beta stay f32 (tiny).
    w_k = w.astype(jnp.bfloat16)
    b2d = b.reshape(1, H).astype(jnp.float32)
    g2d = gamma.reshape(1, H).astype(jnp.float32)
    beta2d = beta.reshape(1, H).astype(jnp.float32)

    # Lane-pad the feature dim to a multiple of 128 so every store is
    # lane-dense (no-op for H = 128, 256, ..., 768, 1024).  Padded columns
    # are exactly zero end-to-end and sliced off afterwards.
    Hp = _round_up(H, 128)
    if Hp != H:
        dp = Hp - H
        x2d = jnp.pad(x2d, ((0, 0), (0, dp)))
        res2d = jnp.pad(res2d, ((0, 0), (0, dp)))
        w_k = jnp.pad(w_k, ((0, dp), (0, dp)))
        b2d = jnp.pad(b2d, ((0, 0), (0, dp)))
        g2d = jnp.pad(g2d, ((0, 0), (0, dp)))
        beta2d = jnp.pad(beta2d, ((0, 0), (0, dp)))

    # Row tile: large (amortize per-step pipeline overhead), but shrunk so the
    # "parallel" row grid has >= 2 steps when M allows (v7x 2-TC / megacore).
    # No row padding: Pallas masks the partial last block; its undefined tail
    # rows are never written back and LayerNorm is strictly per-row.
    tm = max(_ROW_ALIGN, min(tm, _round_up(M, _ROW_ALIGN)))
    if M > _ROW_ALIGN and pl.cdiv(M, tm) < 2:
        tm = _round_up(pl.cdiv(M, 2), _ROW_ALIGN)
    grid = (pl.cdiv(M, tm),)

    x_b = x2d.dtype.itemsize
    r_b = res2d.dtype.itemsize
    o_b = jnp.dtype(out_dtype).itemsize

    # Real double-buffered VMEM footprint + headroom; never claim the whole
    # 64 MiB a v7x TensorCore has.
    vmem_bytes = 2 * (tm * Hp * (x_b + r_b + o_b)   # x / residual / out tiles
                      + Hp * Hp * 2                 # resident bf16 weight
                      + 3 * Hp * 4)                 # bias / gamma / beta
    vmem_limit = min(int(vmem_bytes * 1.5) + (4 << 20), 48 * 1024 * 1024)

    cost = pl.CostEstimate(
        flops=2 * M * Hp * Hp,
        transcendentals=M,                          # one rsqrt per row
        bytes_accessed=(M * Hp * (x_b + r_b + o_b)  # x + residual + output
                        + Hp * Hp * 2               # weight (bf16)
                        + 3 * Hp * 4))              # bias / gamma / beta

    out = pl.pallas_call(
        functools.partial(_self_output_kernel, eps=eps, feat=float(H)),
        out_shape=jax.ShapeDtypeStruct((M, Hp), out_dtype),
        grid=grid,
        in_specs=[
            pl.BlockSpec((tm, Hp), lambda i: (i, 0)),   # activations (row tiles)
            pl.BlockSpec((Hp, Hp), lambda i: (0, 0)),   # weight (VMEM-resident)
            pl.BlockSpec((1, Hp), lambda i: (0, 0)),    # bias (resident)
            pl.BlockSpec((tm, Hp), lambda i: (i, 0)),   # residual (row tiles)
            pl.BlockSpec((1, Hp), lambda i: (0, 0)),    # gamma (resident)
            pl.BlockSpec((1, Hp), lambda i: (0, 0)),    # beta (resident)
        ],
        out_specs=pl.BlockSpec((tm, Hp), lambda i: (i, 0)),   # lane-dense
        compiler_params=pltpu.CompilerParams(
            dimension_semantics=("parallel",),
            vmem_limit_bytes=vmem_limit),
        cost_estimate=cost,
    )(x2d, w_k, b2d, res2d, g2d, beta2d)

    if Hp != H:
        out = out[:, :H]
    return out.reshape(orig_shape[:-1] + (H,))


# ----------------------------------------------------------------------------
# Pure-JAX reference (matches the PyTorch module at inference, f32 math)
# ----------------------------------------------------------------------------
def _reference(hidden_states, input_tensor, w, b, gamma, beta, eps):
    y = hidden_states.astype(jnp.float32) @ w + b
    y = y + input_tensor.astype(jnp.float32)
    mu = jnp.mean(y, axis=-1, keepdims=True)
    var = jnp.mean(jnp.square(y - mu), axis=-1, keepdims=True)
    return (y - mu) / jnp.sqrt(var + eps) * gamma + beta


# ----------------------------------------------------------------------------
if __name__ == "__main__":
    layer_norm_eps = 1e-12
    key = jax.random.PRNGKey(0)
    (kw, kb, kg, kbe, kx1, kr1, kx2, kr2,
     kx3, kr3, kw3, kb3) = jax.random.split(key, 12)

    # ---- Case 1: H = 128 (lane-aligned), bf16 activations, B=2, S=8 -------
    H = 128
    B, S = 2, 8
    w = 0.02 * jax.random.normal(kw, (H, H), jnp.float32)   # [in, out] layout
    b = 0.02 * jax.random.normal(kb, (H,), jnp.float32)
    gamma = 1.0 + 0.1 * jax.random.normal(kg, (H,), jnp.float32)
    beta = 0.1 * jax.random.normal(kbe, (H,), jnp.float32)

    hs = jax.random.normal(kx1, (B, S, H), jnp.float32).astype(jnp.bfloat16)
    res = jax.random.normal(kr1, (B, S, H), jnp.float32).astype(jnp.bfloat16)
    out = m3bert_self_output(hs, res, w, b, gamma, beta, eps=layer_norm_eps)
    jax.block_until_ready(out)
    ref = _reference(hs, res, w, b, gamma, beta, layer_norm_eps)
    assert out.shape == (B, S, H) and out.dtype == jnp.bfloat16
    err1 = float(jnp.max(jnp.abs(out.astype(jnp.float32) - ref)))
    assert jnp.allclose(out.astype(jnp.float32), ref, atol=3e-2, rtol=3e-2), err1

    # ---- Case 2: non-tile-multiple rows (multi-step grid, masked partial
    #      last block), f32 activations, f32 output ---------------------------
    S2 = 137
    hs2 = jax.random.normal(kx2, (B, S2, H), jnp.float32)
    res2 = jax.random.normal(kr2, (B, S2, H), jnp.float32)
    out2 = m3bert_self_output(hs2, res2, w, b, gamma, beta,
                              eps=layer_norm_eps, out_dtype=jnp.float32)
    jax.block_until_ready(out2)
    ref2 = _reference(hs2, res2, w, b, gamma, beta, layer_norm_eps)
    assert out2.shape == (B, S2, H) and out2.dtype == jnp.float32
    err2 = float(jnp.max(jnp.abs(out2 - ref2)))
    assert jnp.allclose(out2, ref2, atol=3e-2, rtol=3e-2), err2

    # ---- Case 3: tiny hidden size (H=32 < 128) -> lane-padded feature path --
    H3 = 32
    w3 = 0.02 * jax.random.normal(kw3, (H3, H3), jnp.float32)
    b3 = 0.02 * jax.random.normal(kb3, (H3,), jnp.float32)
    gamma3 = jnp.ones((H3,), jnp.float32)
    beta3 = jnp.zeros((H3,), jnp.float32)
    hs3 = jax.random.normal(kx3, (B, S, H3), jnp.float32)
    res3 = jax.random.normal(kr3, (B, S, H3), jnp.float32)
    out3 = m3bert_self_output(hs3, res3, w3, b3, gamma3, beta3,
                              eps=layer_norm_eps)
    jax.block_until_ready(out3)
    ref3 = _reference(hs3, res3, w3, b3, gamma3, beta3, layer_norm_eps)
    assert out3.shape == (B, S, H3)
    err3 = float(jnp.max(jnp.abs(out3.astype(jnp.float32) - ref3)))
    assert jnp.allclose(out3.astype(jnp.float32), ref3, atol=3e-2, rtol=3e-2), err3

    print("KERNEL_OK")
</pallas_src>

<mosaic_0001>
module attributes {stable_mosaic.version = 11 : i64} {
  func.func @_self_output_kernel(%arg0: i32, %arg1: memref<16x128xbf16, #tpu.memory_space<vmem>>, %arg2: memref<128x128xbf16, #tpu.memory_space<vmem>>, %arg3: memref<1x128xf32, #tpu.memory_space<vmem>>, %arg4: memref<16x128xbf16, #tpu.memory_space<vmem>>, %arg5: memref<1x128xf32, #tpu.memory_space<vmem>>, %arg6: memref<1x128xf32, #tpu.memory_space<vmem>>, %arg7: memref<16x128xbf16, #tpu.memory_space<vmem>>) attributes {dimension_semantics = [#tpu.dimension_semantics<parallel>], iteration_bounds = array<i64: 1>, scalar_prefetch = 0 : i64, scratch_operands = 0 : i64, tpu.core_type = #tpu.core_type<tc>, window_params = [{transform_indices = @transform_0, window_bounds = array<i64: 16, 128>}, {pipeline_mode = #tpu.pipeline_mode<synchronous>, transform_indices = @transform_1, window_bounds = array<i64: 128, 128>}, {pipeline_mode = #tpu.pipeline_mode<synchronous>, transform_indices = @transform_2, window_bounds = array<i64: 1, 128>}, {transform_indices = @transform_3, window_bounds = array<i64: 16, 128>}, {pipeline_mode = #tpu.pipeline_mode<synchronous>, transform_indices = @transform_4, window_bounds = array<i64: 1, 128>}, {pipeline_mode = #tpu.pipeline_mode<synchronous>, transform_indices = @transform_5, window_bounds = array<i64: 1, 128>}, {transform_indices = @transform_6, window_bounds = array<i64: 16, 128>}]} {
    %c0 = arith.constant 0 : index
    %c0_0 = arith.constant 0 : index
    %0 = vector.load %arg1[%c0, %c0_0] : memref<16x128xbf16, #tpu.memory_space<vmem>>, vector<16x128xbf16>
    %c0_1 = arith.constant 0 : index
    %c0_2 = arith.constant 0 : index
    %1 = vector.load %arg2[%c0_1, %c0_2] : memref<128x128xbf16, #tpu.memory_space<vmem>>, vector<128x128xbf16>
    %cst = arith.constant dense<0.000000e+00> : vector<16x128xf32>
    %2 = tpu.matmul %0, %1, %cst {dimension_numbers = #tpu.dot_dimension_numbers<[1], [0], [0], [1], [0, 0, 1, 1], [], []>} : vector<16x128xbf16>, vector<128x128xbf16>, vector<16x128xf32> -> vector<16x128xf32>
    %c0_3 = arith.constant 0 : index
    %c0_4 = arith.constant 0 : index
    %3 = vector.load %arg3[%c0_3, %c0_4] : memref<1x128xf32, #tpu.memory_space<vmem>>, vector<1x128xf32>
    %4 = vector.broadcast %3 : vector<1x128xf32> to vector<16x128xf32>
    %5 = arith.addf %2, %4 : vector<16x128xf32>
    %c0_5 = arith.constant 0 : index
    %c0_6 = arith.constant 0 : index
    %6 = vector.load %arg4[%c0_5, %c0_6] : memref<16x128xbf16, #tpu.memory_space<vmem>>, vector<16x128xbf16>
    %7 = arith.extf %6 : vector<16x128xbf16> to vector<16x128xf32>
    %8 = arith.addf %5, %7 : vector<16x128xf32>
    %cst_7 = arith.constant dense<0.000000e+00> : vector<16xf32>
    %9 = vector.multi_reduction <add>, %8, %cst_7 [1] : vector<16x128xf32> to vector<16xf32>
    %10 = vector.shape_cast %9 : vector<16xf32> to vector<16x1xf32>
    %cst_8 = arith.constant 7.812500e-03 : f32
    %11 = vector.broadcast %cst_8 : f32 to vector<16x1xf32>
    %12 = arith.mulf %10, %11 : vector<16x1xf32>
    %13 = arith.mulf %8, %8 : vector<16x128xf32>
    %cst_9 = arith.constant dense<0.000000e+00> : vector<16xf32>
    %14 = vector.multi_reduction <add>, %13, %cst_9 [1] : vector<16x128xf32> to vector<16xf32>
    %15 = vector.shape_cast %14 : vector<16xf32> to vector<16x1xf32>
    %cst_10 = arith.constant 7.812500e-03 : f32
    %16 = vector.broadcast %cst_10 : f32 to vector<16x1xf32>
    %17 = arith.mulf %15, %16 : vector<16x1xf32>
    %18 = arith.mulf %12, %12 : vector<16x1xf32>
    %19 = arith.subf %17, %18 : vector<16x1xf32>
    %cst_11 = arith.constant 9.99999996E-13 : f32
    %20 = vector.broadcast %cst_11 : f32 to vector<16x1xf32>
    %21 = arith.addf %19, %20 : vector<16x1xf32>
    %22 = math.rsqrt %21 : vector<16x1xf32>
    %23 = vector.broadcast %12 : vector<16x1xf32> to vector<16x128xf32>
    %24 = arith.subf %8, %23 : vector<16x128xf32>
    %c0_12 = arith.constant 0 : index
    %c0_13 = arith.constant 0 : index
    %25 = vector.load %arg5[%c0_12, %c0_13] : memref<1x128xf32, #tpu.memory_space<vmem>>, vector<1x128xf32>
    %26 = vector.broadcast %22 : vector<16x1xf32> to vector<16x128xf32>
    %27 = vector.broadcast %25 : vector<1x128xf32> to vector<16x128xf32>
    %28 = arith.mulf %26, %27 : vector<16x128xf32>
    %29 = arith.mulf %24, %28 : vector<16x128xf32>
    %c0_14 = arith.constant 0 : index
    %c0_15 = arith.constant 0 : index
    %30 = vector.load %arg6[%c0_14, %c0_15] : memref<1x128xf32, #tpu.memory_space<vmem>>, vector<1x128xf32>
    %31 = vector.broadcast %30 : vector<1x128xf32> to vector<16x128xf32>
    %32 = arith.addf %29, %31 : vector<16x128xf32>
    %33 = arith.truncf %32 : vector<16x128xf32> to vector<16x128xbf16>
    %c0_16 = arith.constant 0 : index
    %c0_17 = arith.constant 0 : index
    %34 = vector.load %arg7[%c0_16, %c0_17] : memref<16x128xbf16, #tpu.memory_space<vmem>>, vector<16x128xbf16>
    tpu.vector_store %arg7[%c0_16, %c0_17], %33 {strides = array<i32>} : memref<16x128xbf16, #tpu.memory_space<vmem>>, vector<16x128xbf16>,
    return
  }
  func.func @transform_0(%arg0: i32) -> (i32, i32) {
    %c0_i32 = arith.constant 0 : i32
    %c0_i32_0 = arith.constant 0 : i32
    return %arg0, %c0_i32 : i32, i32
  }
  func.func @transform_1(%arg0: i32) -> (i32, i32) {
    %c0_i32 = arith.constant 0 : i32
    %c0_i32_0 = arith.constant 0 : i32
    %c0_i32_1 = arith.constant 0 : i32
    return %c0_i32, %c0_i32_0 : i32, i32
  }
  func.func @transform_2(%arg0: i32) -> (i32, i32) {
    %c0_i32 = arith.constant 0 : i32
    %c0_i32_0 = arith.constant 0 : i32
    %c0_i32_1 = arith.constant 0 : i32
    return %c0_i32, %c0_i32_0 : i32, i32
  }
  func.func @transform_3(%arg0: i32) -> (i32, i32) {
    %c0_i32 = arith.constant 0 : i32
    %c0_i32_0 = arith.constant 0 : i32
    return %arg0, %c0_i32 : i32, i32
  }
  func.func @transform_4(%arg0: i32) -> (i32, i32) {
    %c0_i32 = arith.constant 0 : i32
    %c0_i32_0 = arith.constant 0 : i32
    %c0_i32_1 = arith.constant 0 : i32
    return %c0_i32, %c0_i32_0 : i32, i32
  }
  func.func @transform_5(%arg0: i32) -> (i32, i32) {
    %c0_i32 = arith.constant 0 : i32
    %c0_i32_0 = arith.constant 0 : i32
    %c0_i32_1 = arith.constant 0 : i32
    return %c0_i32, %c0_i32_0 : i32, i32
  }
  func.func @transform_6(%arg0: i32) -> (i32, i32) {
    %c0_i32 = arith.constant 0 : i32
    %c0_i32_0 = arith.constant 0 : i32
    return %arg0, %c0_i32 : i32, i32
  }
}

</mosaic_0001>

<llo_original>
// kernel: tpu_custom_call.1
$region0: #{tpu_custom_call.1}
  #allocation0 [shape = 'u32[]', space=smem, size = 0x4, offset = 0x4, fixed_abs, tag = 'smem constant byte address 0x4 - core index']
  #allocation1 [shape = 'u32[144,128]{1,0:T(1,128)}', space=vmem, size = 0x12000, scoped, tag = 'internal scratch']
  %s0 = inlined_call_operand.hbm [shape: bf16[16,128], index: 0, kind: input, shape index: {}]
  %s1 = inlined_call_operand.hbm [shape: bf16[128,128], index: 1, kind: input, shape index: {}]
  %s2 = inlined_call_operand.vmem [shape: f32[1,128], index: 2, kind: input, shape index: {}]
  %s3 = inlined_call_operand.vmem [shape: bf16[16,128], index: 3, kind: input, shape index: {}]
  %s4 = inlined_call_operand.vmem [shape: f32[1,128], index: 4, kind: input, shape index: {}]
  %s5 = inlined_call_operand.vmem [shape: f32[1,128], index: 5, kind: input, shape index: {}]
  %s6 = inlined_call_operand.hbm [shape: bf16[16,128], index: 6, kind: output, shape index: {}]
  %s7 = sld [smem:[#allocation0]]
  $region42: #{tpu_custom_call.1} parent=0
    _
  %s9 = ssub.s32 1, %s7
  %s10 = scalar_select 0, %s9, %s7
  $region1: #{tpu_custom_call.1} parent=0
    #allocation2 [shape = 'u8[4096]{0}', space=vmem, size = 0x1000, scoped, tag = 'input window, operand 0, single buffered']
    #allocation3 [shape = 's32[1]{0}', space=sflag, size = 0x4, scoped, tag = 'scoped memory for tpu_custom_call.1']
    #allocation4 [shape = 's32[1]{0}', space=sflag, size = 0x4, scoped, tag = 'scoped memory for tpu_custom_call.1']
    #allocation5 [shape = 'u8[32768]{0}', space=vmem, size = 0x8000, scoped, tag = 'input window, operand 1, single buffered']
    #allocation6 [shape = 's32[1]{0}', space=sflag, size = 0x4, scoped, tag = 'scoped memory for tpu_custom_call.1']
    #allocation7 [shape = 'u8[4096]{0}', space=vmem, size = 0x1000, scoped, tag = 'output window, operand 0, single buffered']
    %11 = vsyncpa [#allocation3], 0
    %12 = vsyncpa [#allocation6], 0
    %13 = vsyncpa [#allocation4], 0
    // Predicated region
    $region2: #{tpu_custom_call.1} parent=1 // pred_check
      _
    $region3: #{tpu_custom_call.1} parent=1 // pred_check_branch
      %15 = sbr.rel (0) target = $region5
    $region4: #{tpu_custom_call.1} parent=1 // pred_region
      %s17 = ssub.s32 128, 128
      %18 = vsyncadd [#allocation3], %s17
      %s19 = sshll.u32 [#allocation2], 4
      %s20 = int_to_ptr.vmem [resolvable:$true] %s19
      %25 = dma.hbm_to_vmem [thread:$0]  %s0, 128, %s20, [#allocation3], 64, 64, 4
    $region5: #{tpu_custom_call.1} parent=1 // pred_fallthru
      _
    // Predicated region
    $region6: #{tpu_custom_call.1} parent=1 // pred_check
      _
    $region7: #{tpu_custom_call.1} parent=1 // pred_check_branch
      %27 = sbr.rel (0) target = $region9
    $region8: #{tpu_custom_call.1} parent=1 // pred_region
      %s29 = ssub.s32 1024, 1024
      %30 = vsyncadd [#allocation6], %s29
      %s31 = sshll.u32 [#allocation5], 4
      %s32 = int_to_ptr.vmem [resolvable:$true] %s31
      %37 = dma.hbm_to_vmem [thread:$0]  %s1, 1024, %s32, [#allocation6], 64, 64, 4
    $region9: #{tpu_custom_call.1} parent=1 // pred_fallthru
      _
    // Predicated region
    $region10: #{tpu_custom_call.1} parent=1 // pred_check
      _
    $region11: #{tpu_custom_call.1} parent=1 // pred_check_branch
      %39 = sbr.rel (0) target = $region13
    $region12: #{tpu_custom_call.1} parent=1 // pred_region
      _
    $region13: #{tpu_custom_call.1} parent=1 // pred_fallthru
      _
    // Predicated region
    $region14: #{tpu_custom_call.1} parent=1 // pred_check
      _
    $region15: #{tpu_custom_call.1} parent=1 // pred_check_branch
      %41 = sbr.rel (0) target = $region17
    $region16: #{tpu_custom_call.1} parent=1 // pred_region
      _
    $region17: #{tpu_custom_call.1} parent=1 // pred_fallthru
      _
    // Predicated region
    $region18: #{tpu_custom_call.1} parent=1 // pred_check
      _
    $region19: #{tpu_custom_call.1} parent=1 // pred_check_branch
      %43 = sbr.rel (0) target = $region21
    $region20: #{tpu_custom_call.1} parent=1 // pred_region
      _
    $region21: #{tpu_custom_call.1} parent=1 // pred_fallthru
      _
    // Predicated region
    $region22: #{tpu_custom_call.1} parent=1 // pred_check
      _
    $region23: #{tpu_custom_call.1} parent=1 // pred_check_branch
      %45 = sbr.rel (0) target = $region25
    $region24: #{tpu_custom_call.1} parent=1 // pred_region
      _
    $region25: #{tpu_custom_call.1} parent=1 // pred_fallthru
      _
    // Predicated region
    $region26: #{tpu_custom_call.1} parent=1 // pred_check
      _
    $region27: #{tpu_custom_call.1} parent=1 // pred_check_branch
      %47 = sbr.rel (0) target = $region29
    $region28: #{tpu_custom_call.1} parent=1 // pred_region
      %48 = dma.done [#allocation3], 128
    $region29: #{tpu_custom_call.1} parent=1 // pred_fallthru
      _
    // Predicated region
    $region30: #{tpu_custom_call.1} parent=1 // pred_check
      _
    $region31: #{tpu_custom_call.1} parent=1 // pred_check_branch
      %50 = sbr.rel (0) target = $region33
    $region32: #{tpu_custom_call.1} parent=1 // pred_region
      %51 = dma.done [#allocation6], 1024
    $region33: #{tpu_custom_call.1} parent=1 // pred_fallthru
      _
    %v53 = vld [vmem:[#allocation2] sm:$0xf]
    %v54 = vld [vmem:[#allocation2 + $0x4] sm:$0xf]
    %v55 = vld [vmem:[#allocation5] sm:$0xf]
    %v56 = vld [vmem:[#allocation5 + $0x4] sm:$0xf]
    %v57 = vld [vmem:[#allocation5 + $0x8] sm:$0xf]
    %v58 = vld [vmem:[#allocation5 + $0xc] sm:$0xf]
    %v59 = vld [vmem:[#allocation5 + $0x10] sm:$0xf]
    %v60 = vld [vmem:[#allocation5 + $0x14] sm:$0xf]
    %v61 = vld [vmem:[#allocation5 + $0x18] sm:$0xf]
    %v62 = vld [vmem:[#allocation5 + $0x1c] sm:$0xf]
    %v63 = vld [vmem:[#allocation5 + $0x20] sm:$0xf]
    %v64 = vld [vmem:[#allocation5 + $0x24] sm:$0xf]
    %v65 = vld [vmem:[#allocation5 + $0x28] sm:$0xf]
    %v66 = vld [vmem:[#allocation5 + $0x2c] sm:$0xf]
    %v67 = vld [vmem:[#allocation5 + $0x30] sm:$0xf]
    %v68 = vld [vmem:[#allocation5 + $0x34] sm:$0xf]
    %v69 = vld [vmem:[#allocation5 + $0x38] sm:$0xf]
    %v70 = vld [vmem:[#allocation5 + $0x3c] sm:$0xf]
    %v71 = vld [vmem:[%s2] sm:$0x1]
    %v73 = vlaneseq
    %v74 = vshrl.u32 %v73, 7
    %v75 = vsub.s32 0, %v74
    %v76 = vrot.slane %v71, %v75
    %v80 = vunpack.c.l.b16 %v53
    %v81 = vunpack.c.l.b16 %v54
    %v82 = vpack.c.b16 %v81, %v80
    %v100 = vunpack.c.l.b16 %v55
    %v101 = vunpack.c.l.b16 %v56
    %v102 = vunpack.c.l.b16 %v57
    %v103 = vunpack.c.l.b16 %v58
    %v104 = vunpack.c.l.b16 %v59
    %v105 = vunpack.c.l.b16 %v60
    %v106 = vunpack.c.l.b16 %v61
    %v107 = vunpack.c.l.b16 %v62
    %v108 = vunpack.c.l.b16 %v63
    %v109 = vunpack.c.l.b16 %v64
    %v110 = vunpack.c.l.b16 %v65
    %v111 = vunpack.c.l.b16 %v66
    %v112 = vunpack.c.l.b16 %v67
    %v113 = vunpack.c.l.b16 %v68
    %v114 = vunpack.c.l.b16 %v69
    %v115 = vunpack.c.l.b16 %v70
    %v116 = vpack.c.b16 %v101, %v100
    %v117 = vpack.c.b16 %v103, %v102
    %v118 = vpack.c.b16 %v105, %v104
    %v119 = vpack.c.b16 %v107, %v106
    %v120 = vpack.c.b16 %v109, %v108
    %v121 = vpack.c.b16 %v111, %v110
    %v122 = vpack.c.b16 %v113, %v112
    %v123 = vpack.c.b16 %v115, %v114
    %132 = vmatprep.subr.bf16.mxu0 0
    %133 = vmatpush1.bf16.msra.mxu0 %v116
    %134 = vmatprep.subr.bf16.mxu0 0
    %135 = vmatpush1.bf16.msra.mxu0 %v117
    %136 = vmatprep.subr.bf16.mxu0 0
    %137 = vmatpush1.bf16.msra.mxu0 %v118
    %138 = vmatprep.subr.bf16.mxu0 0
    %139 = vmatpush1.bf16.msra.mxu0 %v119
    %140 = vmatprep.subr.bf16.mxu0 0
    %141 = vmatpush1.bf16.msra.mxu0 %v120
    %142 = vmatprep.subr.bf16.mxu0 0
    %143 = vmatpush1.bf16.msra.mxu0 %v121
    %144 = vmatprep.subr.bf16.mxu0 0
    %145 = vmatpush1.bf16.msra.mxu0 %v122
    %146 = vmatprep.subr.bf16.mxu0 0
    %147 = vmatpush1.bf16.msra.mxu0 %v123
    %148 = vmatprep.subr.bf16.mxu0 0
    %149 = vmatpush1.bf16.msra.mxu0 0
    %150 = vmatprep.subr.bf16.mxu0 0
    %151 = vmatpush1.bf16.msra.mxu0 0
    %152 = vmatprep.subr.bf16.mxu0 0
    %153 = vmatpush1.bf16.msra.mxu0 0
    %154 = vmatprep.subr.bf16.mxu0 0
    %155 = vmatpush1.bf16.msra.mxu0 0
    %156 = vmatprep.subr.bf16.mxu0 0
    %157 = vmatpush1.bf16.msra.mxu0 0
    %158 = vmatprep.subr.bf16.mxu0 0
    %159 = vmatpush1.bf16.msra.mxu0 0
    %160 = vmatprep.subr.bf16.mxu0 0
    %161 = vmatpush1.bf16.msra.mxu0 0
    %162 = vmatprep.subr.bf16.mxu0 0
    %163 = vmatpush1.bf16.msra.mxu0 0
    %164 = vmatprep.mubr.bf16.mxu0 0
    %165 = vmatmul.mubr.bf16.gmra.mrb[0].mxu0 %v82
    %v166 = vpop.f32.mrb[0].mxu0
    %v167 = vadd.f32 %v76, %v166
    %v168 = vpop.f32.mrb[0].mxu0
    %v169 = vpop.f32.mrb[0].mxu0
    %v170 = vadd.f32 %v76, %v169
    %v171 = vpop.f32.mrb[0].mxu0
    %172 = vdwg.mxu0
    %v173 = vld [vmem:[%s3] sm:$0xf]
    %v174 = vld [vmem:[%s3 + $0x4] sm:$0xf]
    %v175 = vunpack.c.l.bf16 %v173
    %v176 = vunpack.c.l.bf16 %v174
    %v177 = vadd.f32 %v167, %v175
    %v178 = vadd.f32 %v170, %v176
    %179 = vadd.xlane.f32.xlu0 %v177
    %v180 = vpop.xlane.xlu0 %179
    %181 = vadd.xlane.f32.xlu0 %v178
    %v182 = vpop.xlane.xlu0 %181
    %v183 = vmul.f32 %v180, 0.0078125
    %v184 = vmul.f32 %v182, 0.0078125
    %v185 = vmul.f32 %v177, %v177
    %v186 = vmul.f32 %v178, %v178
    %187 = vadd.xlane.f32.xlu0 %v185
    %v188 = vpop.xlane.xlu0 %187
    %189 = vadd.xlane.f32.xlu0 %v186
    %v190 = vpop.xlane.xlu0 %189
    %v191 = vmul.f32 %v188, 0.0078125
    %v192 = vmul.f32 %v190, 0.0078125
    %v193 = vmul.f32 %v183, %v183
    %v194 = vmul.f32 %v184, %v184
    %v195 = vsub.f32 %v191, %v193
    %v196 = vsub.f32 %v192, %v194
    %v197 = vadd.f32 %v195, 1e-12
    %v198 = vadd.f32 %v196, 1e-12
    %v199 = vrsqrt.pop %v197
    %v200 = vrsqrt.pop %v198
    %v201 = vsub.f32 %v177, %v183
    %v202 = vsub.f32 %v178, %v184
    %v203 = vld [vmem:[%s4] sm:$0x1]
    %v205 = vlaneseq
    %v206 = vshrl.u32 %v205, 7
    %v207 = vsub.s32 0, %v206
    %v208 = vrot.slane %v203, %v207
    %v210 = vmul.f32 %v199, %v208
    %v211 = vmul.f32 %v200, %v208
    %v212 = vmul.f32 %v201, %v210
    %v213 = vmul.f32 %v202, %v211
    %v214 = vld [vmem:[%s5] sm:$0x1]
    %v216 = vlaneseq
    %v217 = vshrl.u32 %v216, 7
    %v218 = vsub.s32 0, %v217
    %v219 = vrot.slane %v214, %v218
    %v221 = vadd.f32 %v212, %v219
    %v222 = vadd.f32 %v213, %v219
    %v223 = vpack.c.bf16 %v222, %v221
    %v225 = vunpack.c.l.b16 %v223
    %v226 = vunpack.c.h.b16 %v223
    %v227 = vpack.c.b16 %v225, %v225
    %v228 = vpack.c.b16 %v226, %v226
    %231 = vst [vmem:[#allocation7] sm:$0xf] %v227
    %232 = vst [vmem:[#allocation7 + $0x4] sm:$0xf] %v228
    // Predicated region
    $region34: #{tpu_custom_call.1} parent=1 // pred_check
      _
    $region35: #{tpu_custom_call.1} parent=1 // pred_check_branch
      %234 = sbr.rel (0) target = $region37
    $region36: #{tpu_custom_call.1} parent=1 // pred_region
      %s236 = ssub.s32 128, 128
      %237 = vsyncadd [#allocation4], %s236
      %s238 = sshll.u32 [#allocation7], 4
      %s239 = int_to_ptr.vmem [resolvable:$true] %s238
      %244 = dma.vmem_to_hbm [thread:$0]  %s239, 128, %s6, [#allocation4], 64, 64, 4
    $region37: #{tpu_custom_call.1} parent=1 // pred_fallthru
      _
    // Predicated region
    $region38: #{tpu_custom_call.1} parent=1 // pred_check
      _
    $region39: #{tpu_custom_call.1} parent=1 // pred_check_branch
      %246 = sbr.rel (0) target = $region41
    $region40: #{tpu_custom_call.1} parent=1 // pred_region
      %247 = dma.done [#allocation4], 128
    $region41: #{tpu_custom_call.1} parent=1 // pred_fallthru
      _
    %248 = vsyncpa [#allocation3], 1
    %249 = vsyncpa [#allocation6], 1
    %250 = vsyncpa [#allocation4], 1

</llo_original>
